<compile_context>
chip_gen: v5e
topology: v5e:2x2
jax: 0.10.0
libtpu: 0.0.40
codegen_flags: <defaults>
</compile_context>

<pallas_src>
import jax
import jax.numpy as jnp
from jax.experimental import pallas as pl
from jax.experimental.pallas import tpu as pltpu


def _round_up(v: int, m: int) -> int:
    return (v + m - 1) // m * m


def _upt_linear_kernel(x_ref, w_ref, b_ref, z_ref):
    # Hot path: cast f32 x tile -> bf16 on the VPU (hidden under DMA), bf16
    # MXU matmul with f32 accumulate, f32 bias add, f32 store.
    x_bf16 = x_ref[...].astype(jnp.bfloat16)
    acc = jnp.dot(x_bf16, w_ref[...], preferred_element_type=jnp.float32)
    z_ref[...] = (acc + b_ref[...]).astype(z_ref.dtype)


def prepare_uni_prob_trans_params(W, b):
    """One-time parameter prep (do NOT redo per forward call).

    Returns (W_bf16, b_row): bf16 weight for the MXU and a (1, D) f32 bias row.
    """
    W_bf16 = jnp.asarray(W, jnp.float32).astype(jnp.bfloat16)
    b_row = jnp.asarray(b, jnp.float32).reshape(1, -1)
    return W_bf16, b_row


def uni_prob_trans_forward(x, log_prob, W_bf16, b_row, logdet, *, tm=512):
    """UniProbTrans.forward: returns (z, log_prob + log|det J|)."""
    N, D = x.shape
    assert W_bf16.shape == (D, D) and b_row.shape == (1, D)

    # Row tile: multiple of 16 (bf16 sublane packing), capped by N.
    tm_eff = min(tm, _round_up(N, 16))
    # Keep >= 2 grid steps when there is enough work, so v7x's two
    # TensorCores (sharded over the "parallel" axis) are both used.
    if tm_eff >= N and N >= 32:
        tm_eff = _round_up(pl.cdiv(N, 2), 16)
    grid = (pl.cdiv(N, tm_eff),)

    z = pl.pallas_call(
        _upt_linear_kernel,
        out_shape=jax.ShapeDtypeStruct((N, D), jnp.float32),
        grid=grid,
        in_specs=[
            # x row tile; last dim == full D (full-array-dim exemption).
            pl.BlockSpec((tm_eff, D), lambda i: (i, 0)),
            # W resident across the whole grid.
            pl.BlockSpec((D, D), lambda i: (0, 0)),
            # bias row, resident.
            pl.BlockSpec((1, D), lambda i: (0, 0)),
        ],
        out_specs=pl.BlockSpec((tm_eff, D), lambda i: (i, 0)),
        compiler_params=pltpu.CompilerParams(
            dimension_semantics=("parallel",),
        ),
    )(x.astype(jnp.float32), W_bf16, b_row)

    # log-det of a linear map's Jacobian is a per-sample constant: one trivial
    # mem-bound scalar add, done with plain XLA off the Pallas vector path.
    logp_out = (jnp.broadcast_to(jnp.asarray(log_prob, jnp.float32), (N,))
                + jnp.asarray(logdet, jnp.float32))
    return z, logp_out


if __name__ == "__main__":
    key = jax.random.PRNGKey(0)

    def run_case(key, N, D):
        k_x, k_lp, k_d, k_u = jax.random.split(key, 4)

        x = jax.random.normal(k_x, (N, D), dtype=jnp.float32)
        log_prob_in = jax.random.normal(k_lp, (N,), dtype=jnp.float32)

        # Deterministic parameter init for the concrete linear UPT:
        # W = diag(d) + strictly-upper-triangular noise  =>  det W = prod(d).
        d = 0.5 + jax.random.uniform(k_d, (D,), dtype=jnp.float32)
        upper = jnp.triu(
            0.1 * jax.random.normal(k_u, (D, D), dtype=jnp.float32), k=1)
        W = jnp.diag(d) + upper
        b = 0.01 * jnp.arange(D, dtype=jnp.float32)

        # One-time parameter prep (outside the per-call hot path).
        W_bf16, b_row = prepare_uni_prob_trans_params(W, b)
        # logdet of the transform that is *actually applied* (bf16-quantized
        # W), so z and the returned log_prob describe the same map.
        d_q = d.astype(jnp.bfloat16).astype(jnp.float32)
        logdet = jnp.sum(jnp.log(d_q))

        z, logp_out = uni_prob_trans_forward(
            x, log_prob_in, W_bf16, b_row, logdet)
        jax.block_until_ready((z, logp_out))

        # Pure-JAX reference using the same bf16 operands the kernel feeds the
        # MXU (f32 accumulate), so tolerances stay tight.
        x_q = x.astype(jnp.bfloat16).astype(jnp.float32)
        W_q = W.astype(jnp.bfloat16).astype(jnp.float32)
        z_ref = jnp.dot(x_q, W_q,
                        precision=jax.lax.Precision.HIGHEST) + b[None, :]
        logp_ref = log_prob_in + logdet

        assert z.shape == (N, D) and logp_out.shape == (N,)
        assert jnp.allclose(z, z_ref, atol=2e-3, rtol=2e-3)
        assert jnp.allclose(logp_out, logp_ref, atol=1e-5, rtol=1e-5)

    # Small case matching the module's (num_samples, feature) convention.
    run_case(jax.random.fold_in(key, 0), N=16, D=32)
    # Larger case exercising a multi-step grid (>= 2 steps) and ragged D.
    run_case(jax.random.fold_in(key, 1), N=512, D=96)

    print("KERNEL_OK")
</pallas_src>

<mosaic_0001>
module attributes {stable_mosaic.version = 11 : i64} {
  func.func @_upt_linear_kernel(%arg0: i32, %arg1: memref<16x32xf32, #tpu.memory_space<vmem>>, %arg2: memref<32x32xbf16, #tpu.memory_space<vmem>>, %arg3: memref<1x32xf32, #tpu.memory_space<vmem>>, %arg4: memref<16x32xf32, #tpu.memory_space<vmem>>) attributes {dimension_semantics = [#tpu.dimension_semantics<parallel>], iteration_bounds = array<i64: 1>, scalar_prefetch = 0 : i64, scratch_operands = 0 : i64, tpu.core_type = #tpu.core_type<tc>, window_params = [{transform_indices = @transform_0, window_bounds = array<i64: 16, 32>}, {pipeline_mode = #tpu.pipeline_mode<synchronous>, transform_indices = @transform_1, window_bounds = array<i64: 32, 32>}, {pipeline_mode = #tpu.pipeline_mode<synchronous>, transform_indices = @transform_2, window_bounds = array<i64: 1, 32>}, {transform_indices = @transform_3, window_bounds = array<i64: 16, 32>}]} {
    %c0 = arith.constant 0 : index
    %c0_0 = arith.constant 0 : index
    %0 = vector.load %arg1[%c0, %c0_0] : memref<16x32xf32, #tpu.memory_space<vmem>>, vector<16x32xf32>
    %1 = arith.truncf %0 : vector<16x32xf32> to vector<16x32xbf16>
    %c0_1 = arith.constant 0 : index
    %c0_2 = arith.constant 0 : index
    %2 = vector.load %arg2[%c0_1, %c0_2] : memref<32x32xbf16, #tpu.memory_space<vmem>>, vector<32x32xbf16>
    %cst = arith.constant dense<0.000000e+00> : vector<16x32xf32>
    %3 = tpu.matmul %1, %2, %cst {dimension_numbers = #tpu.dot_dimension_numbers<[1], [0], [0], [1], [0, 0, 1, 1], [], []>} : vector<16x32xbf16>, vector<32x32xbf16>, vector<16x32xf32> -> vector<16x32xf32>
    %c0_3 = arith.constant 0 : index
    %c0_4 = arith.constant 0 : index
    %4 = vector.load %arg3[%c0_3, %c0_4] : memref<1x32xf32, #tpu.memory_space<vmem>>, vector<1x32xf32>
    %5 = vector.broadcast %4 : vector<1x32xf32> to vector<16x32xf32>
    %6 = arith.addf %3, %5 : vector<16x32xf32>
    %c0_5 = arith.constant 0 : index
    %c0_6 = arith.constant 0 : index
    %7 = vector.load %arg4[%c0_5, %c0_6] : memref<16x32xf32, #tpu.memory_space<vmem>>, vector<16x32xf32>
    tpu.vector_store %arg4[%c0_5, %c0_6], %6 {strides = array<i32>} : memref<16x32xf32, #tpu.memory_space<vmem>>, vector<16x32xf32>,
    return
  }
  func.func @transform_0(%arg0: i32) -> (i32, i32) {
    %c0_i32 = arith.constant 0 : i32
    %c0_i32_0 = arith.constant 0 : i32
    return %arg0, %c0_i32 : i32, i32
  }
  func.func @transform_1(%arg0: i32) -> (i32, i32) {
    %c0_i32 = arith.constant 0 : i32
    %c0_i32_0 = arith.constant 0 : i32
    %c0_i32_1 = arith.constant 0 : i32
    return %c0_i32, %c0_i32_0 : i32, i32
  }
  func.func @transform_2(%arg0: i32) -> (i32, i32) {
    %c0_i32 = arith.constant 0 : i32
    %c0_i32_0 = arith.constant 0 : i32
    %c0_i32_1 = arith.constant 0 : i32
    return %c0_i32, %c0_i32_0 : i32, i32
  }
  func.func @transform_3(%arg0: i32) -> (i32, i32) {
    %c0_i32 = arith.constant 0 : i32
    %c0_i32_0 = arith.constant 0 : i32
    return %arg0, %c0_i32 : i32, i32
  }
}

</mosaic_0001>

<llo_original>
// kernel: tpu_custom_call.1
$region0: #{tpu_custom_call.1}
  #allocation0 [shape = 'u32[]', space=smem, size = 0x4, offset = 0x4, fixed_abs, tag = 'smem constant byte address 0x4 - core index']
  #allocation1 [shape = 'u32[72,128]{1,0:T(1,128)}', space=vmem, size = 0x9000, scoped, tag = 'internal scratch']
  %s0 = inlined_call_operand.hbm [shape: f32[16,32], index: 0, kind: input, shape index: {}]
  %s1 = inlined_call_operand.hbm [shape: bf16[32,32], index: 1, kind: input, shape index: {}]
  %s2 = inlined_call_operand.vmem [shape: f32[1,32], index: 2, kind: input, shape index: {}]
  %s3 = inlined_call_operand.hbm [shape: f32[16,32], index: 3, kind: output, shape index: {}]
  %s4 = sld [smem:[#allocation0]]
  $region30: #{tpu_custom_call.1} parent=0
    _
  %s6 = ssub.s32 1, %s4
  %s7 = scalar_select 0, %s6, %s4
  $region1: #{tpu_custom_call.1} parent=0
    #allocation2 [shape = 'u8[8192]{0}', space=vmem, size = 0x2000, scoped, tag = 'input window, operand 0, single buffered']
    #allocation3 [shape = 's32[1]{0}', space=sflag, size = 0x4, scoped, tag = 'scoped memory for tpu_custom_call.1']
    #allocation4 [shape = 's32[1]{0}', space=sflag, size = 0x4, scoped, tag = 'scoped memory for tpu_custom_call.1']
    #allocation5 [shape = 'u8[8192]{0}', space=vmem, size = 0x2000, scoped, tag = 'input window, operand 1, single buffered']
    #allocation6 [shape = 's32[1]{0}', space=sflag, size = 0x4, scoped, tag = 'scoped memory for tpu_custom_call.1']
    #allocation7 [shape = 'u8[8192]{0}', space=vmem, size = 0x2000, scoped, tag = 'output window, operand 0, single buffered']
    %8 = vsyncpa [#allocation3], 0
    %9 = vsyncpa [#allocation6], 0
    %10 = vsyncpa [#allocation4], 0
    // Predicated region
    $region2: #{tpu_custom_call.1} parent=1 // pred_check
      _
    $region3: #{tpu_custom_call.1} parent=1 // pred_check_branch
      %12 = sbr.rel (0) target = $region5
    $region4: #{tpu_custom_call.1} parent=1 // pred_region
      %14 = vsyncadd [#allocation3], 0
      %s15 = sshll.u32 %s0, 4
      %s16 = int_to_ptr.hbm [resolvable:$true] %s15
      %s17 = sshll.u32 [#allocation2], 4
      %s18 = int_to_ptr.vmem [resolvable:$true] %s17
      %23 = dma.hbm_to_vmem [thread:$0]  %s16, 256, %s18, [#allocation3], 128, 128, 8
    $region5: #{tpu_custom_call.1} parent=1 // pred_fallthru
      _
    // Predicated region
    $region6: #{tpu_custom_call.1} parent=1 // pred_check
      _
    $region7: #{tpu_custom_call.1} parent=1 // pred_check_branch
      %25 = sbr.rel (0) target = $region9
    $region8: #{tpu_custom_call.1} parent=1 // pred_region
      %27 = vsyncadd [#allocation6], 0
      %s28 = sshll.u32 %s1, 4
      %s29 = int_to_ptr.hbm [resolvable:$true] %s28
      %s30 = sshll.u32 [#allocation5], 4
      %s31 = int_to_ptr.vmem [resolvable:$true] %s30
      %36 = dma.hbm_to_vmem [thread:$0]  %s29, 256, %s31, [#allocation6], 64, 64, 4
    $region9: #{tpu_custom_call.1} parent=1 // pred_fallthru
      _
    // Predicated region
    $region10: #{tpu_custom_call.1} parent=1 // pred_check
      _
    $region11: #{tpu_custom_call.1} parent=1 // pred_check_branch
      %38 = sbr.rel (0) target = $region13
    $region12: #{tpu_custom_call.1} parent=1 // pred_region
      _
    $region13: #{tpu_custom_call.1} parent=1 // pred_fallthru
      _
    // Predicated region
    $region14: #{tpu_custom_call.1} parent=1 // pred_check
      _
    $region15: #{tpu_custom_call.1} parent=1 // pred_check_branch
      %40 = sbr.rel (0) target = $region17
    $region16: #{tpu_custom_call.1} parent=1 // pred_region
      %42 = dma.done [#allocation3], 256
    $region17: #{tpu_custom_call.1} parent=1 // pred_fallthru
      _
    // Predicated region
    $region18: #{tpu_custom_call.1} parent=1 // pred_check
      _
    $region19: #{tpu_custom_call.1} parent=1 // pred_check_branch
      %44 = sbr.rel (0) target = $region21
    $region20: #{tpu_custom_call.1} parent=1 // pred_region
      %46 = dma.done [#allocation6], 256
    $region21: #{tpu_custom_call.1} parent=1 // pred_fallthru
      _
    %v48 = vld [vmem:[#allocation2] sm:$0xff]
    %v49 = vld [vmem:[#allocation2 + $0x8] sm:$0xff]
    %v50 = vpack.c.bf16 %v49, %v48
    %v51 = vld [vmem:[#allocation5] sm:$0xf]
    %v52 = vld [vmem:[#allocation5 + $0x4] sm:$0xf]
    %v53 = vld [vmem:[#allocation5 + $0x8] sm:$0xf]
    %v54 = vld [vmem:[#allocation5 + $0xc] sm:$0xf]
    %v55 = vld [vmem:[%s2] sm:$0x1]
    %v57 = vperm.slane %v55, 0
    %v63 = vunpack.c.l.b16 %v51
    %v64 = vunpack.c.l.b16 %v52
    %v65 = vunpack.c.l.b16 %v53
    %v66 = vunpack.c.l.b16 %v54
    %v67 = vpack.c.b16 %v64, %v63
    %v68 = vpack.c.b16 %v66, %v65
    %vm71 = vcmask 261120
    %v73 = vsel %vm71, %v50, 0
    %75 = vmatpush.bf16.msra.mxu0 0
    %76 = vmatpush.bf16.msra.mxu0 0
    %77 = vmatpush.bf16.msra.mxu0 0
    %78 = vmatpush.bf16.msra.mxu0 0
    %79 = vmatpush.bf16.msra.mxu0 0
    %80 = vmatpush.bf16.msra.mxu0 0
    %81 = vmatpush.bf16.msra.mxu0 %v68
    %82 = vmatpush.bf16.msra.mxu0 %v67
    %83 = vmatmul.bf16.gmra.mxu0 %v73
    %v84 = vpop.f32.mrf.mxu0
    %v85 = vadd.f32 %v57, %v84
    %v86 = vpop.f32.mrf.mxu0
    %v87 = vadd.f32 %v57, %v86
    %88 = vdwg.mxu0
    %89 = vst.msk [vmem:[#allocation7] sm:$0xff] %vm71, %v85
    %90 = vst.msk [vmem:[#allocation7 + $0x8] sm:$0xff] %vm71, %v87
    // Predicated region
    $region22: #{tpu_custom_call.1} parent=1 // pred_check
      _
    $region23: #{tpu_custom_call.1} parent=1 // pred_check_branch
      %92 = sbr.rel (0) target = $region25
    $region24: #{tpu_custom_call.1} parent=1 // pred_region
      %94 = vsyncadd [#allocation4], 0
      %s95 = sshll.u32 [#allocation7], 4
      %s96 = int_to_ptr.vmem [resolvable:$true] %s95
      %s97 = sshll.u32 %s3, 4
      %s98 = int_to_ptr.hbm [resolvable:$true] %s97
      %103 = dma.vmem_to_hbm [thread:$0]  %s96, 256, %s98, [#allocation4], 128, 128, 8
    $region25: #{tpu_custom_call.1} parent=1 // pred_fallthru
      _
    // Predicated region
    $region26: #{tpu_custom_call.1} parent=1 // pred_check
      _
    $region27: #{tpu_custom_call.1} parent=1 // pred_check_branch
      %105 = sbr.rel (0) target = $region29
    $region28: #{tpu_custom_call.1} parent=1 // pred_region
      %107 = dma.done [#allocation4], 256
    $region29: #{tpu_custom_call.1} parent=1 // pred_fallthru
      _
    %108 = vsyncpa [#allocation3], 1
    %109 = vsyncpa [#allocation6], 1
    %110 = vsyncpa [#allocation4], 1

</llo_original>
